<compile_context>
chip_gen: v7x
topology: tpu7x:2x2x1
jax: 0.10.0
libtpu: 0.0.40
codegen_flags: <defaults>
</compile_context>

<pallas_src>
import functools

import jax
import jax.numpy as jnp
from jax.experimental import pallas as pl
from jax.experimental.pallas import tpu as pltpu

LANE = 128


def _leaky_relu(x, slope=0.2):
    # max(x, slope*x) == LeakyReLU(slope) for 0 < slope < 1.
    return jnp.maximum(x, slope * x)


def _round_up(n, m):
    return (n + m - 1) // m * m


def _choose_block_b(B):
    """Adaptive batch tile.

    Big tiles amortize per-grid-step overhead; cap at half the batch (8-aligned)
    so large batches always give >= 2 grid steps for megacore sharding on v7x.
    Small batches get a minimal 8-row-aligned tile (no 256-row padding tax).
    """
    b8 = _round_up(max(B, 1), 8)
    if b8 <= 512:
        return b8
    blk = min(2048, _round_up(B, 512))
    half = _round_up((B + 1) // 2, 8)
    return max(256, min(blk, half))


# ---------------------------------------------------------------------------
# Kernel: full fused forward over one (block_b, *) batch tile.
# ---------------------------------------------------------------------------
def mlp_kernel(z_ref,
               w1_ref, b1_ref,
               w2_ref, b2_ref,
               w3_ref, b3_ref,
               w4_ref, b4_ref,
               out_ref):
    # In-kernel cast of the raw f32 features to bf16 (MXU operand dtype).
    x = z_ref[...].astype(w1_ref.dtype)

    # Layer 1: Linear(imSize->256) with BN folded in, then LeakyReLU(0.2).
    h = jnp.dot(x, w1_ref[...], preferred_element_type=jnp.float32)
    h = _leaky_relu(h + b1_ref[...]).astype(w2_ref.dtype)

    # Layer 2: Linear(256->128) + folded BN + LeakyReLU.
    h = jnp.dot(h, w2_ref[...], preferred_element_type=jnp.float32)
    h = _leaky_relu(h + b2_ref[...]).astype(w3_ref.dtype)

    # Layer 3: Linear(128->64) + folded BN + LeakyReLU.
    h = jnp.dot(h, w3_ref[...], preferred_element_type=jnp.float32)
    h = _leaky_relu(h + b3_ref[...]).astype(w4_ref.dtype)

    # Layer 4: Linear(64->n_class), lane-padded to 128 output columns.
    out = jnp.dot(h, w4_ref[...], preferred_element_type=jnp.float32) + b4_ref[...]
    out_ref[...] = out.astype(out_ref.dtype)   # f32 accumulate, bf16 store


# ---------------------------------------------------------------------------
# Parameter prep: fold BN, pad only the class lanes, cast matmul operands to bf16.
# ---------------------------------------------------------------------------
def _fold_and_pad_params(params, nc_pad, compute_dtype=jnp.bfloat16):
    w1 = params["w1"] * params["s1"]
    b1 = params["b1"] * params["s1"] + params["t1"]
    w2 = params["w2"] * params["s2"]
    b2 = params["b2"] * params["s2"] + params["t2"]
    w3 = params["w3"] * params["s3"]
    b3 = params["b3"] * params["s3"] + params["t3"]
    w4 = params["w4"]
    b4 = params["b4"]

    # Zero-pad only the output classes (cols of w4/b4) to the 128-lane width.
    # The contracted K=30 of layer 1 is left unpadded (Mosaic pads in-register).
    w4 = jnp.pad(w4, ((0, 0), (0, nc_pad - w4.shape[1])))
    b4 = jnp.pad(b4, ((0, 0), (0, nc_pad - b4.shape[1])))

    ws = tuple(w.astype(compute_dtype) for w in (w1, w2, w3, w4))
    bs = tuple(b.astype(jnp.float32) for b in (b1, b2, b3, b4))
    return ws, bs


@functools.partial(jax.jit, static_argnames=("block_b",))
def mlp_classifier_forward(z, params, block_b=None):
    B, im = z.shape
    h1 = params["w1"].shape[1]
    h2 = params["w2"].shape[1]
    h3 = params["w3"].shape[1]
    n_class = params["w4"].shape[1]

    if block_b is None:
        block_b = _choose_block_b(B)

    nc_pad = _round_up(n_class, LANE)
    (w1, w2, w3, w4), (b1, b2, b3, b4) = _fold_and_pad_params(params, nc_pad)

    # Pad only the batch dim to a multiple of the tile; padded rows are sliced off.
    b_pad = _round_up(B, block_b)
    z_p = jnp.pad(z, ((0, b_pad - B), (0, 0)))   # stays f32, no feature padding

    grid = (b_pad // block_b,)

    def batch_map(i):
        return (i, 0)

    def const_map(i):
        return (0, 0)

    out = pl.pallas_call(
        mlp_kernel,
        out_shape=jax.ShapeDtypeStruct((b_pad, nc_pad), jnp.bfloat16),
        grid=grid,
        in_specs=[
            pl.BlockSpec((block_b, im), batch_map),   # z tile (streamed, f32)
            pl.BlockSpec((im, h1), const_map),        # weights: VMEM-resident
            pl.BlockSpec((1, h1), const_map),
            pl.BlockSpec((h1, h2), const_map),
            pl.BlockSpec((1, h2), const_map),
            pl.BlockSpec((h2, h3), const_map),
            pl.BlockSpec((1, h3), const_map),
            pl.BlockSpec((h3, nc_pad), const_map),
            pl.BlockSpec((1, nc_pad), const_map),
        ],
        out_specs=pl.BlockSpec((block_b, nc_pad), batch_map),
        compiler_params=pltpu.CompilerParams(
            dimension_semantics=("parallel",)),
    )(z_p, w1, b1, w2, b2, w3, b3, w4, b4)

    # Slice the real rows/classes out of the small bf16 slab; logits back to f32.
    return out[:B, :n_class].astype(jnp.float32)


# ---------------------------------------------------------------------------
# Synthetic parameter init (Linear + eval-mode BatchNorm folded affine).
# ---------------------------------------------------------------------------
def _fold_bn(gamma, beta, running_mean, running_var, eps=1e-5):
    scale = gamma / jnp.sqrt(running_var + eps)
    shift = beta - running_mean * scale
    return scale[None, :], shift[None, :]   # (1, F) for lane broadcast


def init_params(key, imSize=30, n_class=2):
    dims = [(imSize, 256), (256, 128), (128, 64), (64, n_class)]
    params = {}
    keys = jax.random.split(key, 16)
    k_iter = iter(keys)
    for i, (din, dout) in enumerate(dims, start=1):
        lim = 1.0 / jnp.sqrt(jnp.float32(din))
        params[f"w{i}"] = jax.random.uniform(next(k_iter), (din, dout),
                                             jnp.float32, -lim, lim)
        params[f"b{i}"] = jax.random.uniform(next(k_iter), (1, dout),
                                             jnp.float32, -lim, lim)
    for i, (_, dout) in enumerate(dims[:3], start=1):
        gamma = 1.0 + 0.1 * jax.random.normal(next(k_iter), (dout,), jnp.float32)
        beta = 0.1 * jax.random.normal(next(k_iter), (dout,), jnp.float32)
        rmean = 0.05 * jax.random.normal(jax.random.fold_in(keys[-1], i),
                                         (dout,), jnp.float32)
        rvar = 1.0 + 0.1 * jnp.abs(
            jax.random.normal(jax.random.fold_in(keys[-2], i), (dout,), jnp.float32))
        s, t = _fold_bn(gamma, beta, rmean, rvar)
        params[f"s{i}"] = s
        params[f"t{i}"] = t
    return params


def reference_forward(z, p, compute_dtype=jnp.float32):
    """Plain-JAX eval-mode reference with the same BN fold / precision recipe."""
    w1 = p["w1"] * p["s1"]
    b1 = p["b1"] * p["s1"] + p["t1"]
    w2 = p["w2"] * p["s2"]
    b2 = p["b2"] * p["s2"] + p["t2"]
    w3 = p["w3"] * p["s3"]
    b3 = p["b3"] * p["s3"] + p["t3"]

    def mm(x, w):
        return jnp.dot(x.astype(compute_dtype), w.astype(compute_dtype),
                       preferred_element_type=jnp.float32)

    h = _leaky_relu(mm(z, w1) + b1)
    h = _leaky_relu(mm(h, w2) + b2)
    h = _leaky_relu(mm(h, w3) + b3)
    return mm(h, p["w4"]) + p["b4"]


if __name__ == "__main__":
    imSize, n_class = 30, 2
    key = jax.random.PRNGKey(0)
    k_z, k_p, k_z2 = jax.random.split(key, 3)
    params = init_params(k_p, imSize=imSize, n_class=n_class)

    # --- Small batch (adaptive tile -> single 8-row step) ---------------------
    batch = 8
    z = jax.random.normal(k_z, (batch, imSize), jnp.float32)
    out = jax.block_until_ready(mlp_classifier_forward(z, params))
    assert out.shape == (batch, n_class)

    ref_bf16 = reference_forward(z, params, compute_dtype=jnp.bfloat16)
    assert jnp.allclose(out, ref_bf16, atol=2e-2, rtol=2e-2), \
        "mismatch vs precision-matched JAX reference (small batch)"
    ref_f32 = reference_forward(z, params, compute_dtype=jnp.float32)
    assert jnp.allclose(out, ref_f32, atol=5e-2, rtol=5e-2), \
        "mismatch vs f32 JAX reference (small batch)"

    # --- Larger batch (adaptive tile -> 2-step 'parallel' grid, batch remainder)
    batch2 = 600
    z2 = jax.random.normal(k_z2, (batch2, imSize), jnp.float32)
    out2 = jax.block_until_ready(mlp_classifier_forward(z2, params))
    assert out2.shape == (batch2, n_class)
    ref2 = reference_forward(z2, params, compute_dtype=jnp.bfloat16)
    assert jnp.allclose(out2, ref2, atol=2e-2, rtol=2e-2), \
        "mismatch vs precision-matched JAX reference (large batch)"

    print("KERNEL_OK")
</pallas_src>

<mosaic_0001>
module attributes {stable_mosaic.version = 11 : i64} {
  func.func @mlp_kernel(%arg0: i32, %arg1: memref<8x30xf32, #tpu.memory_space<vmem>>, %arg2: memref<30x256xbf16, #tpu.memory_space<vmem>>, %arg3: memref<1x256xf32, #tpu.memory_space<vmem>>, %arg4: memref<256x128xbf16, #tpu.memory_space<vmem>>, %arg5: memref<1x128xf32, #tpu.memory_space<vmem>>, %arg6: memref<128x64xbf16, #tpu.memory_space<vmem>>, %arg7: memref<1x64xf32, #tpu.memory_space<vmem>>, %arg8: memref<64x128xbf16, #tpu.memory_space<vmem>>, %arg9: memref<1x128xf32, #tpu.memory_space<vmem>>, %arg10: memref<8x128xbf16, #tpu.memory_space<vmem>>) attributes {dimension_semantics = [#tpu.dimension_semantics<parallel>], iteration_bounds = array<i64: 1>, scalar_prefetch = 0 : i64, scratch_operands = 0 : i64, tpu.core_type = #tpu.core_type<tc>, window_params = [{transform_indices = @transform_0, window_bounds = array<i64: 8, 30>}, {pipeline_mode = #tpu.pipeline_mode<synchronous>, transform_indices = @transform_1, window_bounds = array<i64: 30, 256>}, {pipeline_mode = #tpu.pipeline_mode<synchronous>, transform_indices = @transform_2, window_bounds = array<i64: 1, 256>}, {pipeline_mode = #tpu.pipeline_mode<synchronous>, transform_indices = @transform_3, window_bounds = array<i64: 256, 128>}, {pipeline_mode = #tpu.pipeline_mode<synchronous>, transform_indices = @transform_4, window_bounds = array<i64: 1, 128>}, {pipeline_mode = #tpu.pipeline_mode<synchronous>, transform_indices = @transform_5, window_bounds = array<i64: 128, 64>}, {pipeline_mode = #tpu.pipeline_mode<synchronous>, transform_indices = @transform_6, window_bounds = array<i64: 1, 64>}, {pipeline_mode = #tpu.pipeline_mode<synchronous>, transform_indices = @transform_7, window_bounds = array<i64: 64, 128>}, {pipeline_mode = #tpu.pipeline_mode<synchronous>, transform_indices = @transform_8, window_bounds = array<i64: 1, 128>}, {transform_indices = @transform_9, window_bounds = array<i64: 8, 128>}]} {
    %c0 = arith.constant 0 : index
    %c0_0 = arith.constant 0 : index
    %0 = vector.load %arg1[%c0, %c0_0] : memref<8x30xf32, #tpu.memory_space<vmem>>, vector<8x30xf32>
    %1 = arith.truncf %0 : vector<8x30xf32> to vector<8x30xbf16>
    %c0_1 = arith.constant 0 : index
    %c0_2 = arith.constant 0 : index
    %2 = vector.load %arg2[%c0_1, %c0_2] : memref<30x256xbf16, #tpu.memory_space<vmem>>, vector<30x256xbf16>
    %cst = arith.constant dense<0.000000e+00> : vector<8x256xf32>
    %3 = tpu.matmul %1, %2, %cst {dimension_numbers = #tpu.dot_dimension_numbers<[1], [0], [0], [1], [0, 0, 1, 1], [], []>} : vector<8x30xbf16>, vector<30x256xbf16>, vector<8x256xf32> -> vector<8x256xf32>
    %c0_3 = arith.constant 0 : index
    %c0_4 = arith.constant 0 : index
    %4 = vector.load %arg3[%c0_3, %c0_4] : memref<1x256xf32, #tpu.memory_space<vmem>>, vector<1x256xf32>
    %5 = vector.broadcast %4 : vector<1x256xf32> to vector<8x256xf32>
    %6 = arith.addf %3, %5 : vector<8x256xf32>
    %cst_5 = arith.constant 2.000000e-01 : f32
    %7 = vector.broadcast %cst_5 : f32 to vector<8x256xf32>
    %8 = arith.mulf %7, %6 : vector<8x256xf32>
    %9 = arith.maximumf %6, %8 : vector<8x256xf32>
    %10 = arith.truncf %9 : vector<8x256xf32> to vector<8x256xbf16>
    %c0_6 = arith.constant 0 : index
    %c0_7 = arith.constant 0 : index
    %11 = vector.load %arg4[%c0_6, %c0_7] : memref<256x128xbf16, #tpu.memory_space<vmem>>, vector<256x128xbf16>
    %cst_8 = arith.constant dense<0.000000e+00> : vector<8x128xf32>
    %12 = tpu.matmul %10, %11, %cst_8 {dimension_numbers = #tpu.dot_dimension_numbers<[1], [0], [0], [1], [0, 0, 1, 1], [], []>} : vector<8x256xbf16>, vector<256x128xbf16>, vector<8x128xf32> -> vector<8x128xf32>
    %c0_9 = arith.constant 0 : index
    %c0_10 = arith.constant 0 : index
    %13 = vector.load %arg5[%c0_9, %c0_10] : memref<1x128xf32, #tpu.memory_space<vmem>>, vector<1x128xf32>
    %14 = vector.broadcast %13 : vector<1x128xf32> to vector<8x128xf32>
    %15 = arith.addf %12, %14 : vector<8x128xf32>
    %cst_11 = arith.constant 2.000000e-01 : f32
    %16 = vector.broadcast %cst_11 : f32 to vector<8x128xf32>
    %17 = arith.mulf %16, %15 : vector<8x128xf32>
    %18 = arith.maximumf %15, %17 : vector<8x128xf32>
    %19 = arith.truncf %18 : vector<8x128xf32> to vector<8x128xbf16>
    %c0_12 = arith.constant 0 : index
    %c0_13 = arith.constant 0 : index
    %20 = vector.load %arg6[%c0_12, %c0_13] : memref<128x64xbf16, #tpu.memory_space<vmem>>, vector<128x64xbf16>
    %cst_14 = arith.constant dense<0.000000e+00> : vector<8x64xf32>
    %21 = tpu.matmul %19, %20, %cst_14 {dimension_numbers = #tpu.dot_dimension_numbers<[1], [0], [0], [1], [0, 0, 1, 1], [], []>} : vector<8x128xbf16>, vector<128x64xbf16>, vector<8x64xf32> -> vector<8x64xf32>
    %c0_15 = arith.constant 0 : index
    %c0_16 = arith.constant 0 : index
    %22 = vector.load %arg7[%c0_15, %c0_16] : memref<1x64xf32, #tpu.memory_space<vmem>>, vector<1x64xf32>
    %23 = vector.broadcast %22 : vector<1x64xf32> to vector<8x64xf32>
    %24 = arith.addf %21, %23 : vector<8x64xf32>
    %cst_17 = arith.constant 2.000000e-01 : f32
    %25 = vector.broadcast %cst_17 : f32 to vector<8x64xf32>
    %26 = arith.mulf %25, %24 : vector<8x64xf32>
    %27 = arith.maximumf %24, %26 : vector<8x64xf32>
    %28 = arith.truncf %27 : vector<8x64xf32> to vector<8x64xbf16>
    %c0_18 = arith.constant 0 : index
    %c0_19 = arith.constant 0 : index
    %29 = vector.load %arg8[%c0_18, %c0_19] : memref<64x128xbf16, #tpu.memory_space<vmem>>, vector<64x128xbf16>
    %cst_20 = arith.constant dense<0.000000e+00> : vector<8x128xf32>
    %30 = tpu.matmul %28, %29, %cst_20 {dimension_numbers = #tpu.dot_dimension_numbers<[1], [0], [0], [1], [0, 0, 1, 1], [], []>} : vector<8x64xbf16>, vector<64x128xbf16>, vector<8x128xf32> -> vector<8x128xf32>
    %c0_21 = arith.constant 0 : index
    %c0_22 = arith.constant 0 : index
    %31 = vector.load %arg9[%c0_21, %c0_22] : memref<1x128xf32, #tpu.memory_space<vmem>>, vector<1x128xf32>
    %32 = vector.broadcast %31 : vector<1x128xf32> to vector<8x128xf32>
    %33 = arith.addf %30, %32 : vector<8x128xf32>
    %34 = arith.truncf %33 : vector<8x128xf32> to vector<8x128xbf16>
    %c0_23 = arith.constant 0 : index
    %c0_24 = arith.constant 0 : index
    %35 = vector.load %arg10[%c0_23, %c0_24] : memref<8x128xbf16, #tpu.memory_space<vmem>>, vector<8x128xbf16>
    tpu.vector_store %arg10[%c0_23, %c0_24], %34 {strides = array<i32>} : memref<8x128xbf16, #tpu.memory_space<vmem>>, vector<8x128xbf16>,
    return
  }
  func.func @transform_0(%arg0: i32) -> (i32, i32) {
    %c0_i32 = arith.constant 0 : i32
    %c0_i32_0 = arith.constant 0 : i32
    return %arg0, %c0_i32 : i32, i32
  }
  func.func @transform_1(%arg0: i32) -> (i32, i32) {
    %c0_i32 = arith.constant 0 : i32
    %c0_i32_0 = arith.constant 0 : i32
    %c0_i32_1 = arith.constant 0 : i32
    return %c0_i32, %c0_i32_0 : i32, i32
  }
  func.func @transform_2(%arg0: i32) -> (i32, i32) {
    %c0_i32 = arith.constant 0 : i32
    %c0_i32_0 = arith.constant 0 : i32
    %c0_i32_1 = arith.constant 0 : i32
    return %c0_i32, %c0_i32_0 : i32, i32
  }
  func.func @transform_3(%arg0: i32) -> (i32, i32) {
    %c0_i32 = arith.constant 0 : i32
    %c0_i32_0 = arith.constant 0 : i32
    %c0_i32_1 = arith.constant 0 : i32
    return %c0_i32, %c0_i32_0 : i32, i32
  }
  func.func @transform_4(%arg0: i32) -> (i32, i32) {
    %c0_i32 = arith.constant 0 : i32
    %c0_i32_0 = arith.constant 0 : i32
    %c0_i32_1 = arith.constant 0 : i32
    return %c0_i32, %c0_i32_0 : i32, i32
  }
  func.func @transform_5(%arg0: i32) -> (i32, i32) {
    %c0_i32 = arith.constant 0 : i32
    %c0_i32_0 = arith.constant 0 : i32
    %c0_i32_1 = arith.constant 0 : i32
    return %c0_i32, %c0_i32_0 : i32, i32
  }
  func.func @transform_6(%arg0: i32) -> (i32, i32) {
    %c0_i32 = arith.constant 0 : i32
    %c0_i32_0 = arith.constant 0 : i32
    %c0_i32_1 = arith.constant 0 : i32
    return %c0_i32, %c0_i32_0 : i32, i32
  }
  func.func @transform_7(%arg0: i32) -> (i32, i32) {
    %c0_i32 = arith.constant 0 : i32
    %c0_i32_0 = arith.constant 0 : i32
    %c0_i32_1 = arith.constant 0 : i32
    return %c0_i32, %c0_i32_0 : i32, i32
  }
  func.func @transform_8(%arg0: i32) -> (i32, i32) {
    %c0_i32 = arith.constant 0 : i32
    %c0_i32_0 = arith.constant 0 : i32
    %c0_i32_1 = arith.constant 0 : i32
    return %c0_i32, %c0_i32_0 : i32, i32
  }
  func.func @transform_9(%arg0: i32) -> (i32, i32) {
    %c0_i32 = arith.constant 0 : i32
    %c0_i32_0 = arith.constant 0 : i32
    return %arg0, %c0_i32 : i32, i32
  }
}

</mosaic_0001>

<llo_original>
// kernel: mlp_classifier_forward.1
$region0: #{mlp_classifier_forward.1}
  #allocation0 [shape = 'u32[]', space=smem, size = 0x4, offset = 0x4, fixed_abs, tag = 'smem constant byte address 0x4 - core index']
  #allocation1 [shape = 'u32[144,128]{1,0:T(1,128)}', space=vmem, size = 0x12000, scoped, tag = 'internal scratch']
  %s0 = inlined_call_operand.vmem [shape: f32[8,30], index: 0, kind: input, shape index: {}]
  %s1 = inlined_call_operand.vmem [shape: bf16[30,256], index: 1, kind: input, shape index: {}]
  %s2 = inlined_call_operand.vmem [shape: f32[1,256], index: 2, kind: input, shape index: {}]
  %s3 = inlined_call_operand.vmem [shape: bf16[256,128], index: 3, kind: input, shape index: {}]
  %s4 = inlined_call_operand.vmem [shape: f32[1,128], index: 4, kind: input, shape index: {}]
  %s5 = inlined_call_operand.vmem [shape: bf16[128,64], index: 5, kind: input, shape index: {}]
  %s6 = inlined_call_operand.vmem [shape: f32[1,64], index: 6, kind: input, shape index: {}]
  %s7 = inlined_call_operand.vmem [shape: bf16[64,128], index: 7, kind: input, shape index: {}]
  %s8 = inlined_call_operand.vmem [shape: f32[1,128], index: 8, kind: input, shape index: {}]
  %s9 = inlined_call_operand.vmem [shape: bf16[8,128], index: 9, kind: output, shape index: {}]
  %s10 = sld [smem:[#allocation0]]
  $region46: #{mlp_classifier_forward.1} parent=0
    _
  %s12 = ssub.s32 1, %s10
  %s13 = scalar_select 0, %s12, %s10
  // Predicated region
  $region2: #{mlp_classifier_forward.1} parent=0 // pred_check
    _
  $region3: #{mlp_classifier_forward.1} parent=0 // pred_check_branch
    %15 = sbr.rel (0) target = $region5
  $region4: #{mlp_classifier_forward.1} parent=0 // pred_region
    _
  $region5: #{mlp_classifier_forward.1} parent=0 // pred_fallthru
    _
  // Predicated region
  $region6: #{mlp_classifier_forward.1} parent=0 // pred_check
    _
  $region7: #{mlp_classifier_forward.1} parent=0 // pred_check_branch
    %17 = sbr.rel (0) target = $region9
  $region8: #{mlp_classifier_forward.1} parent=0 // pred_region
    _
  $region9: #{mlp_classifier_forward.1} parent=0 // pred_fallthru
    _
  // Predicated region
  $region10: #{mlp_classifier_forward.1} parent=0 // pred_check
    _
  $region11: #{mlp_classifier_forward.1} parent=0 // pred_check_branch
    %19 = sbr.rel (0) target = $region13
  $region12: #{mlp_classifier_forward.1} parent=0 // pred_region
    _
  $region13: #{mlp_classifier_forward.1} parent=0 // pred_fallthru
    _
  // Predicated region
  $region14: #{mlp_classifier_forward.1} parent=0 // pred_check
    _
  $region15: #{mlp_classifier_forward.1} parent=0 // pred_check_branch
    %21 = sbr.rel (0) target = $region17
  $region16: #{mlp_classifier_forward.1} parent=0 // pred_region
    _
  $region17: #{mlp_classifier_forward.1} parent=0 // pred_fallthru
    _
  // Predicated region
  $region18: #{mlp_classifier_forward.1} parent=0 // pred_check
    _
  $region19: #{mlp_classifier_forward.1} parent=0 // pred_check_branch
    %23 = sbr.rel (0) target = $region21
  $region20: #{mlp_classifier_forward.1} parent=0 // pred_region
    _
  $region21: #{mlp_classifier_forward.1} parent=0 // pred_fallthru
    _
  // Predicated region
  $region22: #{mlp_classifier_forward.1} parent=0 // pred_check
    _
  $region23: #{mlp_classifier_forward.1} parent=0 // pred_check_branch
    %25 = sbr.rel (0) target = $region25
  $region24: #{mlp_classifier_forward.1} parent=0 // pred_region
    _
  $region25: #{mlp_classifier_forward.1} parent=0 // pred_fallthru
    _
  // Predicated region
  $region26: #{mlp_classifier_forward.1} parent=0 // pred_check
    _
  $region27: #{mlp_classifier_forward.1} parent=0 // pred_check_branch
    %27 = sbr.rel (0) target = $region29
  $region28: #{mlp_classifier_forward.1} parent=0 // pred_region
    _
  $region29: #{mlp_classifier_forward.1} parent=0 // pred_fallthru
    _
  // Predicated region
  $region30: #{mlp_classifier_forward.1} parent=0 // pred_check
    _
  $region31: #{mlp_classifier_forward.1} parent=0 // pred_check_branch
    %29 = sbr.rel (0) target = $region33
  $region32: #{mlp_classifier_forward.1} parent=0 // pred_region
    _
  $region33: #{mlp_classifier_forward.1} parent=0 // pred_fallthru
    _
  // Predicated region
  $region34: #{mlp_classifier_forward.1} parent=0 // pred_check
    _
  $region35: #{mlp_classifier_forward.1} parent=0 // pred_check_branch
    %31 = sbr.rel (0) target = $region37
  $region36: #{mlp_classifier_forward.1} parent=0 // pred_region
    _
  $region37: #{mlp_classifier_forward.1} parent=0 // pred_fallthru
    _
  %v33 = vld [vmem:[%s0] sm:$0xff]
  %v34 = vpack.c.bf16 %v33, %v33
  %v35 = vld [vmem:[%s1] sm:$0xff]
  %v36 = vld [vmem:[%s1 + $0x8] sm:$0xff]
  %v37 = vld [vmem:[%s1 + $0x10] sm:$0xff]
  %v38 = vld [vmem:[%s1 + $0x18] sm:$0x77]
  %v39 = vld [vmem:[%s2] sm:$0x3]
  %v41 = vlaneseq
  %v42 = vshrl.u32 %v41, 7
  %v43 = vsub.s32 0, %v42
  %v44 = vrot.slane %v39, %v43
  %v45 = vlaneseq
  %v46 = vshrl.u32 %v45, 7
  %v47 = vsub.s32 1, %v46
  %v48 = vrot.slane %v39, %v47
  %v55 = vunpack.c.l.b16 %v35
  %v56 = vunpack.c.h.b16 %v35
  %v57 = vunpack.c.l.b16 %v36
  %v58 = vunpack.c.h.b16 %v36
  %v59 = vunpack.c.l.b16 %v37
  %v60 = vunpack.c.h.b16 %v37
  %v61 = vunpack.c.l.b16 %v38
  %v62 = vunpack.c.h.b16 %v38
  %v63 = vpack.c.b16 %v57, %v55
  %v64 = vpack.c.b16 %v58, %v56
  %v65 = vpack.c.b16 %v61, %v59
  %v66 = vpack.c.b16 %v62, %v60
  %vm69 = vcmask 244736
  %v71 = vsel %vm69, %v34, 0
  %vm73 = vcmask 1046528
  %v75 = vsel %vm73, %v65, 0
  %v78 = vsel %vm73, %v66, 0
  %80 = vmatprep.subr.bf16.mxu0 %v64
  %81 = vmatpush1.bf16.msra.mxu0 %v63
  %82 = vmatprep.subr.bf16.mxu0 %v78
  %83 = vmatpush1.bf16.msra.mxu0 %v75
  %84 = vmatprep.subr.bf16.mxu0 0
  %85 = vmatpush1.bf16.msra.mxu0 0
  %86 = vmatprep.subr.bf16.mxu0 0
  %87 = vmatpush1.bf16.msra.mxu0 0
  %88 = vmatprep.subr.bf16.mxu0 0
  %89 = vmatpush1.bf16.msra.mxu0 0
  %90 = vmatprep.subr.bf16.mxu0 0
  %91 = vmatpush1.bf16.msra.mxu0 0
  %92 = vmatprep.subr.bf16.mxu0 0
  %93 = vmatpush1.bf16.msra.mxu0 0
  %94 = vmatprep.subr.bf16.mxu0 0
  %95 = vmatpush1.bf16.msra.mxu0 0
  %96 = vmatprep.subr.bf16.mxu0 0
  %97 = vmatpush1.bf16.msra.mxu0 0
  %98 = vmatprep.subr.bf16.mxu0 0
  %99 = vmatpush1.bf16.msra.mxu0 0
  %100 = vmatprep.subr.bf16.mxu0 0
  %101 = vmatpush1.bf16.msra.mxu0 0
  %102 = vmatprep.subr.bf16.mxu0 0
  %103 = vmatpush1.bf16.msra.mxu0 0
  %104 = vmatprep.subr.bf16.mxu0 0
  %105 = vmatpush1.bf16.msra.mxu0 0
  %106 = vmatprep.subr.bf16.mxu0 0
  %107 = vmatpush1.bf16.msra.mxu0 0
  %108 = vmatprep.subr.bf16.mxu0 0
  %109 = vmatpush1.bf16.msra.mxu0 0
  %110 = vmatprep.subr.bf16.mxu0 0
  %111 = vmatpush1.bf16.msra.mxu0 0
  %112 = vmatprep.mubr.bf16.mxu0 0
  %113 = vmatmul.mubr.bf16.gmra.mrb[0].mxu0 %v71
  %v114 = vpop.f32.mrb[0].mxu0
  %v115 = vadd.f32 %v44, %v114
  %v116 = vpop.f32.mrb[0].mxu0
  %v117 = vadd.f32 %v48, %v116
  %v118 = vpop.f32.mrb[0].mxu0
  %v119 = vpop.f32.mrb[0].mxu0
  %120 = vdwg.mxu0
  %v121 = vmul.f32 %v115, 0.2
  %v122 = vmul.f32 %v117, 0.2
  %v123 = vmax.f32 %v115, %v121
  %v124 = vmax.f32 %v117, %v122
  %v125 = vpack.c.bf16 %v123, %v123
  %v126 = vpack.c.bf16 %v124, %v124
  %v127 = vld [vmem:[%s3] sm:$0xf]
  %v128 = vld [vmem:[%s3 + $0x4] sm:$0xf]
  %v129 = vld [vmem:[%s3 + $0x8] sm:$0xf]
  %v130 = vld [vmem:[%s3 + $0xc] sm:$0xf]
  %v131 = vld [vmem:[%s3 + $0x10] sm:$0xf]
  %v132 = vld [vmem:[%s3 + $0x14] sm:$0xf]
  %v133 = vld [vmem:[%s3 + $0x18] sm:$0xf]
  %v134 = vld [vmem:[%s3 + $0x1c] sm:$0xf]
  %v135 = vld [vmem:[%s3 + $0x20] sm:$0xf]
  %v136 = vld [vmem:[%s3 + $0x24] sm:$0xf]
  %v137 = vld [vmem:[%s3 + $0x28] sm:$0xf]
  %v138 = vld [vmem:[%s3 + $0x2c] sm:$0xf]
  %v139 = vld [vmem:[%s3 + $0x30] sm:$0xf]
  %v140 = vld [vmem:[%s3 + $0x34] sm:$0xf]
  %v141 = vld [vmem:[%s3 + $0x38] sm:$0xf]
  %v142 = vld [vmem:[%s3 + $0x3c] sm:$0xf]
  %v143 = vld [vmem:[%s3 + $0x40] sm:$0xf]
  %v144 = vld [vmem:[%s3 + $0x44] sm:$0xf]
  %v145 = vld [vmem:[%s3 + $0x48] sm:$0xf]
  %v146 = vld [vmem:[%s3 + $0x4c] sm:$0xf]
  %v147 = vld [vmem:[%s3 + $0x50] sm:$0xf]
  %v148 = vld [vmem:[%s3 + $0x54] sm:$0xf]
  %v149 = vld [vmem:[%s3 + $0x58] sm:$0xf]
  %v150 = vld [vmem:[%s3 + $0x5c] sm:$0xf]
  %v151 = vld [vmem:[%s3 + $0x60] sm:$0xf]
  %v152 = vld [vmem:[%s3 + $0x64] sm:$0xf]
  %v153 = vld [vmem:[%s3 + $0x68] sm:$0xf]
  %v154 = vld [vmem:[%s3 + $0x6c] sm:$0xf]
  %v155 = vld [vmem:[%s3 + $0x70] sm:$0xf]
  %v156 = vld [vmem:[%s3 + $0x74] sm:$0xf]
  %v157 = vld [vmem:[%s3 + $0x78] sm:$0xf]
  %v158 = vld [vmem:[%s3 + $0x7c] sm:$0xf]
  %v159 = vld [vmem:[%s4] sm:$0x1]
  %v161 = vlaneseq
  %v162 = vshrl.u32 %v161, 7
  %v163 = vsub.s32 0, %v162
  %v164 = vrot.slane %v159, %v163
  %v198 = vunpack.c.l.b16 %v127
  %v199 = vunpack.c.l.b16 %v128
  %v200 = vunpack.c.l.b16 %v129
  %v201 = vunpack.c.l.b16 %v130
  %v202 = vunpack.c.l.b16 %v131
  %v203 = vunpack.c.l.b16 %v132
  %v204 = vunpack.c.l.b16 %v133
  %v205 = vunpack.c.l.b16 %v134
  %v206 = vunpack.c.l.b16 %v135
  %v207 = vunpack.c.l.b16 %v136
  %v208 = vunpack.c.l.b16 %v137
  %v209 = vunpack.c.l.b16 %v138
  %v210 = vunpack.c.l.b16 %v139
  %v211 = vunpack.c.l.b16 %v140
  %v212 = vunpack.c.l.b16 %v141
  %v213 = vunpack.c.l.b16 %v142
  %v214 = vunpack.c.l.b16 %v143
  %v215 = vunpack.c.l.b16 %v144
  %v216 = vunpack.c.l.b16 %v145
  %v217 = vunpack.c.l.b16 %v146
  %v218 = vunpack.c.l.b16 %v147
  %v219 = vunpack.c.l.b16 %v148
  %v220 = vunpack.c.l.b16 %v149
  %v221 = vunpack.c.l.b16 %v150
  %v222 = vunpack.c.l.b16 %v151
  %v223 = vunpack.c.l.b16 %v152
  %v224 = vunpack.c.l.b16 %v153
  %v225 = vunpack.c.l.b16 %v154
  %v226 = vunpack.c.l.b16 %v155
  %v227 = vunpack.c.l.b16 %v156
  %v228 = vunpack.c.l.b16 %v157
  %v229 = vunpack.c.l.b16 %v158
  %v230 = vpack.c.b16 %v199, %v198
  %v231 = vpack.c.b16 %v201, %v200
  %v232 = vpack.c.b16 %v203, %v202
  %v233 = vpack.c.b16 %v205, %v204
  %v234 = vpack.c.b16 %v207, %v206
  %v235 = vpack.c.b16 %v209, %v208
  %v236 = vpack.c.b16 %v211, %v210
  %v237 = vpack.c.b16 %v213, %v212
  %v238 = vpack.c.b16 %v215, %v214
  %v239 = vpack.c.b16 %v217, %v216
  %v240 = vpack.c.b16 %v219, %v218
  %v241 = vpack.c.b16 %v221, %v220
  %v242 = vpack.c.b16 %v223, %v222
  %v243 = vpack.c.b16 %v225, %v224
  %v244 = vpack.c.b16 %v227, %v226
  %v245 = vpack.c.b16 %v229, %v228
  %262 = vmatprep.subr.bf16.mxu0 0
  %263 = vmatpush1.bf16.msra.mxu0 %v230
  %264 = vmatprep.subr.bf16.mxu0 0
  %265 = vmatpush1.bf16.msra.mxu0 %v231
  %266 = vmatprep.subr.bf16.mxu0 0
  %267 = vmatpush1.bf16.msra.mxu0 %v232
  %268 = vmatprep.subr.bf16.mxu0 0
  %269 = vmatpush1.bf16.msra.mxu0 %v233
  %270 = vmatprep.subr.bf16.mxu0 0
  %271 = vmatpush1.bf16.msra.mxu0 %v234
  %272 = vmatprep.subr.bf16.mxu0 0
  %273 = vmatpush1.bf16.msra.mxu0 %v235
  %274 = vmatprep.subr.bf16.mxu0 0
  %275 = vmatpush1.bf16.msra.mxu0 %v236
  %276 = vmatprep.subr.bf16.mxu0 0
  %277 = vmatpush1.bf16.msra.mxu0 %v237
  %278 = vmatprep.subr.bf16.mxu0 0
  %279 = vmatpush1.bf16.msra.mxu0 %v238
  %280 = vmatprep.subr.bf16.mxu0 0
  %281 = vmatpush1.bf16.msra.mxu0 %v239
  %282 = vmatprep.subr.bf16.mxu0 0
  %283 = vmatpush1.bf16.msra.mxu0 %v240
  %284 = vmatprep.subr.bf16.mxu0 0
  %285 = vmatpush1.bf16.msra.mxu0 %v241
  %286 = vmatprep.subr.bf16.mxu0 0
  %287 = vmatpush1.bf16.msra.mxu0 %v242
  %288 = vmatprep.subr.bf16.mxu0 0
  %289 = vmatpush1.bf16.msra.mxu0 %v243
  %290 = vmatprep.subr.bf16.mxu0 0
  %291 = vmatpush1.bf16.msra.mxu0 %v244
  %292 = vmatprep.subr.bf16.mxu0 0
  %293 = vmatpush1.bf16.msra.mxu0 %v245
  %294 = vmatprep.mubr.bf16.mxu0 %v126
  %295 = vmatmul.mubr.bf16.gmra.mrb[0].mxu0 %v125
  %v296 = vpop.f32.mrb[0].mxu0
  %v297 = vadd.f32 %v164, %v296
  %v298 = vpop.f32.mrb[0].mxu0
  %v299 = vpop.f32.mrb[0].mxu0
  %v300 = vpop.f32.mrb[0].mxu0
  %301 = vdwg.mxu0
  %v302 = vmul.f32 %v297, 0.2
  %v303 = vmax.f32 %v297, %v302
  %v304 = vpack.c.bf16 %v303, %v303
  %v305 = vld [vmem:[%s5] sm:$0xf]
  %v306 = vld [vmem:[%s5 + $0x4] sm:$0xf]
  %v307 = vld [vmem:[%s5 + $0x8] sm:$0xf]
  %v308 = vld [vmem:[%s5 + $0xc] sm:$0xf]
  %v309 = vld [vmem:[%s5 + $0x10] sm:$0xf]
  %v310 = vld [vmem:[%s5 + $0x14] sm:$0xf]
  %v311 = vld [vmem:[%s5 + $0x18] sm:$0xf]
  %v312 = vld [vmem:[%s5 + $0x1c] sm:$0xf]
  %v313 = vld [vmem:[%s5 + $0x20] sm:$0xf]
  %v314 = vld [vmem:[%s5 + $0x24] sm:$0xf]
  %v315 = vld [vmem:[%s5 + $0x28] sm:$0xf]
  %v316 = vld [vmem:[%s5 + $0x2c] sm:$0xf]
  %v317 = vld [vmem:[%s5 + $0x30] sm:$0xf]
  %v318 = vld [vmem:[%s5 + $0x34] sm:$0xf]
  %v319 = vld [vmem:[%s5 + $0x38] sm:$0xf]
  %v320 = vld [vmem:[%s5 + $0x3c] sm:$0xf]
  %v321 = vld [vmem:[%s6] sm:$0x1]
  %v323 = vlaneseq
  %v324 = vshrl.u32 %v323, 7
  %v325 = vsub.s32 0, %v324
  %v326 = vrot.slane %v321, %v325
  %v344 = vunpack.c.l.b16 %v305
  %v345 = vunpack.c.l.b16 %v306
  %v346 = vunpack.c.l.b16 %v307
  %v347 = vunpack.c.l.b16 %v308
  %v348 = vunpack.c.l.b16 %v309
  %v349 = vunpack.c.l.b16 %v310
  %v350 = vunpack.c.l.b16 %v311
  %v351 = vunpack.c.l.b16 %v312
  %v352 = vunpack.c.l.b16 %v313
  %v353 = vunpack.c.l.b16 %v314
  %v354 = vunpack.c.l.b16 %v315
  %v355 = vunpack.c.l.b16 %v316
  %v356 = vunpack.c.l.b16 %v317
  %v357 = vunpack.c.l.b16 %v318
  %v358 = vunpack.c.l.b16 %v319
  %v359 = vunpack.c.l.b16 %v320
  %v360 = vpack.c.b16 %v345, %v344
  %v361 = vpack.c.b16 %v347, %v346
  %v362 = vpack.c.b16 %v349, %v348
  %v363 = vpack.c.b16 %v351, %v350
  %v364 = vpack.c.b16 %v353, %v352
  %v365 = vpack.c.b16 %v355, %v354
  %v366 = vpack.c.b16 %v357, %v356
  %v367 = vpack.c.b16 %v359, %v358
  %376 = vmatprep.subr.bf16.mxu0 0
  %377 = vmatpush1.bf16.msra.mxu0 %v360
  %378 = vmatprep.subr.bf16.mxu0 0
  %379 = vmatpush1.bf16.msra.mxu0 %v361
  %380 = vmatprep.subr.bf16.mxu0 0
  %381 = vmatpush1.bf16.msra.mxu0 %v362
  %382 = vmatprep.subr.bf16.mxu0 0
  %383 = vmatpush1.bf16.msra.mxu0 %v363
  %384 = vmatprep.subr.bf16.mxu0 0
  %385 = vmatpush1.bf16.msra.mxu0 %v364
  %386 = vmatprep.subr.bf16.mxu0 0
  %387 = vmatpush1.bf16.msra.mxu0 %v365
  %388 = vmatprep.subr.bf16.mxu0 0
  %389 = vmatpush1.bf16.msra.mxu0 %v366
  %390 = vmatprep.subr.bf16.mxu0 0
  %391 = vmatpush1.bf16.msra.mxu0 %v367
  %392 = vmatprep.subr.bf16.mxu0 0
  %393 = vmatpush1.bf16.msra.mxu0 0
  %394 = vmatprep.subr.bf16.mxu0 0
  %395 = vmatpush1.bf16.msra.mxu0 0
  %396 = vmatprep.subr.bf16.mxu0 0
  %397 = vmatpush1.bf16.msra.mxu0 0
  %398 = vmatprep.subr.bf16.mxu0 0
  %399 = vmatpush1.bf16.msra.mxu0 0
  %400 = vmatprep.subr.bf16.mxu0 0
  %401 = vmatpush1.bf16.msra.mxu0 0
  %402 = vmatprep.subr.bf16.mxu0 0
  %403 = vmatpush1.bf16.msra.mxu0 0
  %404 = vmatprep.subr.bf16.mxu0 0
  %405 = vmatpush1.bf16.msra.mxu0 0
  %406 = vmatprep.subr.bf16.mxu0 0
  %407 = vmatpush1.bf16.msra.mxu0 0
  %408 = vmatprep.mubr.bf16.mxu0 0
  %409 = vmatmul.mubr.bf16.gmra.mrb[0].mxu0 %v304
  %v410 = vpop.f32.mrb[0].mxu0
  %v411 = vadd.f32 %v326, %v410
  %v412 = vpop.f32.mrb[0].mxu0
  %v413 = vpop.f32.mrb[0].mxu0
  %v414 = vpop.f32.mrb[0].mxu0
  %415 = vdwg.mxu0
  %v416 = vmul.f32 %v411, 0.2
  %v417 = vmax.f32 %v411, %v416
  %v418 = vpack.c.bf16 %v417, %v417
  %v419 = vld [vmem:[%s7] sm:$0xf]
  %v420 = vld [vmem:[%s7 + $0x4] sm:$0xf]
  %v421 = vld [vmem:[%s7 + $0x8] sm:$0xf]
  %v422 = vld [vmem:[%s7 + $0xc] sm:$0xf]
  %v423 = vld [vmem:[%s7 + $0x10] sm:$0xf]
  %v424 = vld [vmem:[%s7 + $0x14] sm:$0xf]
  %v425 = vld [vmem:[%s7 + $0x18] sm:$0xf]
  %v426 = vld [vmem:[%s7 + $0x1c] sm:$0xf]
  %v427 = vld [vmem:[%s8] sm:$0x1]
  %v429 = vlaneseq
  %v430 = vshrl.u32 %v429, 7
  %v431 = vsub.s32 0, %v430
  %v432 = vrot.slane %v427, %v431
  %v442 = vunpack.c.l.b16 %v419
  %v443 = vunpack.c.l.b16 %v420
  %v444 = vunpack.c.l.b16 %v421
  %v445 = vunpack.c.l.b16 %v422
  %v446 = vunpack.c.l.b16 %v423
  %v447 = vunpack.c.l.b16 %v424
  %v448 = vunpack.c.l.b16 %v425
  %v449 = vunpack.c.l.b16 %v426
  %v450 = vpack.c.b16 %v443, %v442
  %v451 = vpack.c.b16 %v445, %v444
  %v452 = vpack.c.b16 %v447, %v446
  %v453 = vpack.c.b16 %v449, %v448
  %vm458 = vcmask 523264
  %v460 = vsel %vm458, %v418, 0
  %462 = vmatprep.subr.bf16.mxu0 0
  %463 = vmatpush1.bf16.msra.mxu0 %v450
  %464 = vmatprep.subr.bf16.mxu0 0
  %465 = vmatpush1.bf16.msra.mxu0 %v451
  %466 = vmatprep.subr.bf16.mxu0 0
  %467 = vmatpush1.bf16.msra.mxu0 %v452
  %468 = vmatprep.subr.bf16.mxu0 0
  %469 = vmatpush1.bf16.msra.mxu0 %v453
  %470 = vmatprep.subr.bf16.mxu0 0
  %471 = vmatpush1.bf16.msra.mxu0 0
  %472 = vmatprep.subr.bf16.mxu0 0
  %473 = vmatpush1.bf16.msra.mxu0 0
  %474 = vmatprep.subr.bf16.mxu0 0
  %475 = vmatpush1.bf16.msra.mxu0 0
  %476 = vmatprep.subr.bf16.mxu0 0
  %477 = vmatpush1.bf16.msra.mxu0 0
  %478 = vmatprep.subr.bf16.mxu0 0
  %479 = vmatpush1.bf16.msra.mxu0 0
  %480 = vmatprep.subr.bf16.mxu0 0
  %481 = vmatpush1.bf16.msra.mxu0 0
  %482 = vmatprep.subr.bf16.mxu0 0
  %483 = vmatpush1.bf16.msra.mxu0 0
  %484 = vmatprep.subr.bf16.mxu0 0
  %485 = vmatpush1.bf16.msra.mxu0 0
  %486 = vmatprep.subr.bf16.mxu0 0
  %487 = vmatpush1.bf16.msra.mxu0 0
  %488 = vmatprep.subr.bf16.mxu0 0
  %489 = vmatpush1.bf16.msra.mxu0 0
  %490 = vmatprep.subr.bf16.mxu0 0
  %491 = vmatpush1.bf16.msra.mxu0 0
  %492 = vmatprep.subr.bf16.mxu0 0
  %493 = vmatpush1.bf16.msra.mxu0 0
  %494 = vmatprep.mubr.bf16.mxu0 0
  %495 = vmatmul.mubr.bf16.gmra.mrb[0].mxu0 %v460
  %v496 = vpop.f32.mrb[0].mxu0
  %v497 = vadd.f32 %v432, %v496
  %v498 = vpop.f32.mrb[0].mxu0
  %v499 = vpop.f32.mrb[0].mxu0
  %v500 = vpop.f32.mrb[0].mxu0
  %501 = vdwg.mxu0
  %v502 = vpack.c.bf16 %v497, %v497
  %503 = vst [vmem:[%s9] sm:$0xf] %v502
  // Predicated region
  $region38: #{mlp_classifier_forward.1} parent=0 // pred_check
    _
  $region39: #{mlp_classifier_forward.1} parent=0 // pred_check_branch
    %505 = sbr.rel (0) target = $region41
  $region40: #{mlp_classifier_forward.1} parent=0 // pred_region
    _
  $region41: #{mlp_classifier_forward.1} parent=0 // pred_fallthru
    _
  // Predicated region
  $region42: #{mlp_classifier_forward.1} parent=0 // pred_check
    _
  $region43: #{mlp_classifier_forward.1} parent=0 // pred_check_branch
    %507 = sbr.rel (0) target = $region45
  $region44: #{mlp_classifier_forward.1} parent=0 // pred_region
    _
  $region45: #{mlp_classifier_forward.1} parent=0 // pred_fallthru
    _

</llo_original>
